<compile_context>
chip_gen: v7x
topology: tpu7x:2x2x1
jax: 0.10.0
libtpu: 0.0.40
codegen_flags: <defaults>
</compile_context>

<pallas_src>
import math
import jax
import jax.numpy as jnp
from jax import lax
from jax.experimental import pallas as pl
from jax.experimental.pallas import tpu as pltpu


def _make_kernel(num_head, head_dim, scale, gamma, alpha, use_effect):
    def kernel(x_ref, w_ref, c_ref, o_ref):
        x = x_ref[...].astype(jnp.float32)   # (TB, D)
        w = w_ref[...].astype(jnp.float32)   # (TC, D)
        c = c_ref[...].astype(jnp.float32)   # (1,  D)

        eff_heads = []
        nw_heads = []
        for h in range(num_head):            # static Python loop (traced once)
            lo = h * head_dim                # lane-aligned static slice boundaries
            xh = x[:, lo:lo + head_dim]
            wh = w[:, lo:lo + head_dim]

            # causal_norm on the classifier weight: w / (||w||_2 + gamma),
            # as reciprocal-multiply.  approx=False keeps full f32 accuracy
            # (approx=True would be ~1e-4 relative error on the logits).
            w_norm = jnp.sqrt(jnp.sum(wh * wh, axis=-1, keepdims=True))
            nw_heads.append(wh * pl.reciprocal(w_norm + gamma, approx=False))

            # l2_norm on x via rsqrt, with the logit scale folded into the factor.
            nx_s = xh * (scale * lax.rsqrt(jnp.sum(xh * xh, axis=-1, keepdims=True)))

            if use_effect:
                # TDE counterfactual removal (eval mode, use_effect=True)
                ch = c[:, lo:lo + head_dim]
                nc = ch * lax.rsqrt(jnp.sum(ch * ch, axis=-1, keepdims=True))
                # nx / nc are unit vectors by construction -> cos == dot.
                # nx_s already carries `scale`, so cos_s == scale * cos and
                # nx_s - alpha*cos_s*nc == scale * (nx - cos*alpha*nc).
                cos_s = jnp.sum(nx_s * nc, axis=-1, keepdims=True)
                eff_heads.append(nx_s - (alpha * cos_s) * nc)
            else:
                # training / no-effect path: y = mm(normed_x * scale, normed_w.T)
                eff_heads.append(nx_s)

        eff = eff_heads[0] if num_head == 1 else jnp.concatenate(eff_heads, axis=-1)
        nw = nw_heads[0] if num_head == 1 else jnp.concatenate(nw_heads, axis=-1)

        # One K = D matmul; transpose-free (contract last dim of both operands).
        o_ref[...] = lax.dot_general(
            eff, nw, dimension_numbers=(((1,), (1,)), ((), ())),
            preferred_element_type=jnp.float32)

    return kernel


def causal_norm_classifier_fwd(x, weight, embed, *, num_head=2, tau=16.0,
                               alpha=3.0, gamma=0.03125, use_effect=True,
                               block_b=256, block_c=256):
    """Pallas implementation of Causal_Norm_Classifier.forward (eval mode)."""
    B, D = x.shape
    C, Dw = weight.shape
    assert D == Dw and D % num_head == 0
    head_dim = D // num_head
    scale = tau / num_head

    # Full extent for small shapes (single grid step); tile batch/classes for
    # production long-tail-classifier shapes so the pipeline has enough steps.
    TB = B if B <= block_b else block_b
    TC = C if C <= block_c else block_c

    kernel = _make_kernel(num_head, head_dim, scale, gamma, alpha, use_effect)

    return pl.pallas_call(
        kernel,
        out_shape=jax.ShapeDtypeStruct((B, C), jnp.float32),
        grid=(pl.cdiv(B, TB), pl.cdiv(C, TC)),
        in_specs=[
            pl.BlockSpec((TB, D), lambda i, j: (i, 0)),   # x batch tile (full D)
            pl.BlockSpec((TC, D), lambda i, j: (j, 0)),   # weight class tile (full D)
            pl.BlockSpec((1, D), lambda i, j: (0, 0)),    # embed (broadcast)
        ],
        out_specs=pl.BlockSpec((TB, TC), lambda i, j: (i, j)),
        compiler_params=pltpu.CompilerParams(
            dimension_semantics=("parallel", "parallel")),
    )(x, weight, embed)


def _reference(x, w, c, *, num_head, tau, alpha, gamma):
    """Pure-JAX transcription of the PyTorch forward (eval, use_effect=True)."""
    scale = tau / num_head
    hd = x.shape[1] // num_head

    def split(a):
        return [a[:, i * hd:(i + 1) * hd] for i in range(num_head)]

    def l2(a):
        return a / jnp.linalg.norm(a, axis=1, keepdims=True)

    def cnorm(a):
        return a / (jnp.linalg.norm(a, axis=1, keepdims=True) + gamma)

    nw = [cnorm(h) for h in split(w)]
    nx = [l2(h) for h in split(x)]
    nc = [l2(h) for h in split(c)]

    y = 0.0
    for xh, ch, wh in zip(nx, nc, nw):
        cos = (xh * ch).sum(-1, keepdims=True)
        cos = cos / jnp.linalg.norm(xh, axis=1, keepdims=True)
        cos = cos / jnp.linalg.norm(ch, axis=1, keepdims=True)
        y = y + ((xh - cos * alpha * ch) * scale) @ wh.T
    return y


if __name__ == "__main__":
    # Small, TPU-friendly shapes consistent with the module:
    #   batch=8, feat_dim=256, num_classes=128, num_head=2 (head_dim=128, lane-aligned)
    B, D, C = 8, 256, 128
    num_head, tau, alpha, gamma = 2, 16.0, 3.0, 0.03125

    key = jax.random.PRNGKey(0)
    kx, kw, kc = jax.random.split(key, 3)

    # weight init matches reset_parameters: uniform(-stdv, stdv), stdv = 1/sqrt(feat_dim)
    stdv = 1.0 / math.sqrt(D)
    weight = jax.random.uniform(kw, (C, D), jnp.float32, minval=-stdv, maxval=stdv)

    x = jax.random.normal(kx, (B, D), jnp.float32)

    # self.embed is a running mean of features updated during training; the PyTorch
    # init value is all-zeros, which would produce NaN under l2_norm in eval mode,
    # so we use a deterministic non-zero stand-in for a trained running mean.
    embed = jax.random.normal(kc, (1, D), jnp.float32)

    # TODO(synk): the training-mode EMA update of self.embed (self.mu bookkeeping)
    # is stateful Python-side logic and is not part of this forward kernel.

    y = causal_norm_classifier_fwd(x, weight, embed, num_head=num_head, tau=tau,
                                   alpha=alpha, gamma=gamma, use_effect=True)
    jax.block_until_ready(y)

    y_ref = _reference(x, weight, embed, num_head=num_head, tau=tau,
                       alpha=alpha, gamma=gamma)
    assert y.shape == (B, C)
    assert jnp.allclose(y, y_ref, rtol=2e-5, atol=2e-5), "mismatch vs reference"

    print("KERNEL_OK")
</pallas_src>

<mosaic_0001>
module attributes {stable_mosaic.version = 11 : i64} {
  func.func @kernel(%arg0: i32, %arg1: i32, %arg2: memref<8x256xf32, #tpu.memory_space<vmem>>, %arg3: memref<128x256xf32, #tpu.memory_space<vmem>>, %arg4: memref<1x256xf32, #tpu.memory_space<vmem>>, %arg5: memref<8x128xf32, #tpu.memory_space<vmem>>) attributes {dimension_semantics = [#tpu.dimension_semantics<parallel>, #tpu.dimension_semantics<parallel>], iteration_bounds = array<i64: 1, 1>, scalar_prefetch = 0 : i64, scratch_operands = 0 : i64, tpu.core_type = #tpu.core_type<tc>, window_params = [{transform_indices = @transform_0, window_bounds = array<i64: 8, 256>}, {transform_indices = @transform_1, window_bounds = array<i64: 128, 256>}, {pipeline_mode = #tpu.pipeline_mode<synchronous>, transform_indices = @transform_2, window_bounds = array<i64: 1, 256>}, {transform_indices = @transform_3, window_bounds = array<i64: 8, 128>}]} {
    %c0 = arith.constant 0 : index
    %c0_0 = arith.constant 0 : index
    %0 = vector.load %arg2[%c0, %c0_0] : memref<8x256xf32, #tpu.memory_space<vmem>>, vector<8x256xf32>
    %c0_1 = arith.constant 0 : index
    %c0_2 = arith.constant 0 : index
    %1 = vector.load %arg3[%c0_1, %c0_2] : memref<128x256xf32, #tpu.memory_space<vmem>>, vector<128x256xf32>
    %c0_3 = arith.constant 0 : index
    %c0_4 = arith.constant 0 : index
    %2 = vector.load %arg4[%c0_3, %c0_4] : memref<1x256xf32, #tpu.memory_space<vmem>>, vector<1x256xf32>
    %3 = vector.extract_strided_slice %0 {offsets = [0, 0], sizes = [8, 128], strides = [1, 1]} : vector<8x256xf32> to vector<8x128xf32>
    %4 = vector.extract_strided_slice %1 {offsets = [0, 0], sizes = [128, 128], strides = [1, 1]} : vector<128x256xf32> to vector<128x128xf32>
    %5 = arith.mulf %4, %4 : vector<128x128xf32>
    %cst = arith.constant dense<0.000000e+00> : vector<128xf32>
    %6 = vector.multi_reduction <add>, %5, %cst [1] : vector<128x128xf32> to vector<128xf32>
    %7 = vector.shape_cast %6 : vector<128xf32> to vector<128x1xf32>
    %8 = math.sqrt %7 : vector<128x1xf32>
    %cst_5 = arith.constant 3.125000e-02 : f32
    %9 = vector.broadcast %cst_5 : f32 to vector<128x1xf32>
    %10 = arith.addf %8, %9 : vector<128x1xf32>
    %11 = tpu.reciprocal %10 : vector<128x1xf32> -> vector<128x1xf32>
    %12 = vector.broadcast %11 : vector<128x1xf32> to vector<128x128xf32>
    %13 = arith.mulf %4, %12 : vector<128x128xf32>
    %14 = arith.mulf %3, %3 : vector<8x128xf32>
    %cst_6 = arith.constant dense<0.000000e+00> : vector<8xf32>
    %15 = vector.multi_reduction <add>, %14, %cst_6 [1] : vector<8x128xf32> to vector<8xf32>
    %16 = vector.shape_cast %15 : vector<8xf32> to vector<8x1xf32>
    %17 = math.rsqrt %16 : vector<8x1xf32>
    %cst_7 = arith.constant 8.000000e+00 : f32
    %18 = vector.broadcast %cst_7 : f32 to vector<8x1xf32>
    %19 = arith.mulf %18, %17 : vector<8x1xf32>
    %20 = vector.broadcast %19 : vector<8x1xf32> to vector<8x128xf32>
    %21 = arith.mulf %3, %20 : vector<8x128xf32>
    %22 = vector.extract_strided_slice %2 {offsets = [0, 0], sizes = [1, 128], strides = [1, 1]} : vector<1x256xf32> to vector<1x128xf32>
    %23 = arith.mulf %22, %22 : vector<1x128xf32>
    %cst_8 = arith.constant dense<0.000000e+00> : vector<1xf32>
    %24 = vector.multi_reduction <add>, %23, %cst_8 [1] : vector<1x128xf32> to vector<1xf32>
    %25 = vector.shape_cast %24 : vector<1xf32> to vector<1x1xf32>
    %26 = math.rsqrt %25 : vector<1x1xf32>
    %27 = vector.broadcast %26 : vector<1x1xf32> to vector<1x128xf32>
    %28 = arith.mulf %22, %27 : vector<1x128xf32>
    %29 = vector.broadcast %28 : vector<1x128xf32> to vector<8x128xf32>
    %30 = arith.mulf %21, %29 : vector<8x128xf32>
    %cst_9 = arith.constant dense<0.000000e+00> : vector<8xf32>
    %31 = vector.multi_reduction <add>, %30, %cst_9 [1] : vector<8x128xf32> to vector<8xf32>
    %32 = vector.shape_cast %31 : vector<8xf32> to vector<8x1xf32>
    %cst_10 = arith.constant 3.000000e+00 : f32
    %33 = vector.broadcast %cst_10 : f32 to vector<8x1xf32>
    %34 = arith.mulf %33, %32 : vector<8x1xf32>
    %35 = vector.broadcast %34 : vector<8x1xf32> to vector<8x128xf32>
    %36 = vector.broadcast %28 : vector<1x128xf32> to vector<8x128xf32>
    %37 = arith.mulf %35, %36 : vector<8x128xf32>
    %38 = arith.subf %21, %37 : vector<8x128xf32>
    %39 = vector.extract_strided_slice %0 {offsets = [0, 128], sizes = [8, 128], strides = [1, 1]} : vector<8x256xf32> to vector<8x128xf32>
    %40 = vector.extract_strided_slice %1 {offsets = [0, 128], sizes = [128, 128], strides = [1, 1]} : vector<128x256xf32> to vector<128x128xf32>
    %41 = arith.mulf %40, %40 : vector<128x128xf32>
    %cst_11 = arith.constant dense<0.000000e+00> : vector<128xf32>
    %42 = vector.multi_reduction <add>, %41, %cst_11 [1] : vector<128x128xf32> to vector<128xf32>
    %43 = vector.shape_cast %42 : vector<128xf32> to vector<128x1xf32>
    %44 = math.sqrt %43 : vector<128x1xf32>
    %cst_12 = arith.constant 3.125000e-02 : f32
    %45 = vector.broadcast %cst_12 : f32 to vector<128x1xf32>
    %46 = arith.addf %44, %45 : vector<128x1xf32>
    %47 = tpu.reciprocal %46 : vector<128x1xf32> -> vector<128x1xf32>
    %48 = vector.broadcast %47 : vector<128x1xf32> to vector<128x128xf32>
    %49 = arith.mulf %40, %48 : vector<128x128xf32>
    %50 = arith.mulf %39, %39 : vector<8x128xf32>
    %cst_13 = arith.constant dense<0.000000e+00> : vector<8xf32>
    %51 = vector.multi_reduction <add>, %50, %cst_13 [1] : vector<8x128xf32> to vector<8xf32>
    %52 = vector.shape_cast %51 : vector<8xf32> to vector<8x1xf32>
    %53 = math.rsqrt %52 : vector<8x1xf32>
    %cst_14 = arith.constant 8.000000e+00 : f32
    %54 = vector.broadcast %cst_14 : f32 to vector<8x1xf32>
    %55 = arith.mulf %54, %53 : vector<8x1xf32>
    %56 = vector.broadcast %55 : vector<8x1xf32> to vector<8x128xf32>
    %57 = arith.mulf %39, %56 : vector<8x128xf32>
    %58 = vector.extract_strided_slice %2 {offsets = [0, 128], sizes = [1, 128], strides = [1, 1]} : vector<1x256xf32> to vector<1x128xf32>
    %59 = arith.mulf %58, %58 : vector<1x128xf32>
    %cst_15 = arith.constant dense<0.000000e+00> : vector<1xf32>
    %60 = vector.multi_reduction <add>, %59, %cst_15 [1] : vector<1x128xf32> to vector<1xf32>
    %61 = vector.shape_cast %60 : vector<1xf32> to vector<1x1xf32>
    %62 = math.rsqrt %61 : vector<1x1xf32>
    %63 = vector.broadcast %62 : vector<1x1xf32> to vector<1x128xf32>
    %64 = arith.mulf %58, %63 : vector<1x128xf32>
    %65 = vector.broadcast %64 : vector<1x128xf32> to vector<8x128xf32>
    %66 = arith.mulf %57, %65 : vector<8x128xf32>
    %cst_16 = arith.constant dense<0.000000e+00> : vector<8xf32>
    %67 = vector.multi_reduction <add>, %66, %cst_16 [1] : vector<8x128xf32> to vector<8xf32>
    %68 = vector.shape_cast %67 : vector<8xf32> to vector<8x1xf32>
    %cst_17 = arith.constant 3.000000e+00 : f32
    %69 = vector.broadcast %cst_17 : f32 to vector<8x1xf32>
    %70 = arith.mulf %69, %68 : vector<8x1xf32>
    %71 = vector.broadcast %70 : vector<8x1xf32> to vector<8x128xf32>
    %72 = vector.broadcast %64 : vector<1x128xf32> to vector<8x128xf32>
    %73 = arith.mulf %71, %72 : vector<8x128xf32>
    %74 = arith.subf %57, %73 : vector<8x128xf32>
    %75 = tpu.concatenate %38, %74 in 1 : vector<8x128xf32>, vector<8x128xf32> -> vector<8x256xf32>
    %76 = tpu.concatenate %13, %49 in 1 : vector<128x128xf32>, vector<128x128xf32> -> vector<128x256xf32>
    %cst_18 = arith.constant dense<0.000000e+00> : vector<8x128xf32>
    %77 = tpu.matmul %75, %76, %cst_18 {dimension_numbers = #tpu.dot_dimension_numbers<[1], [1], [0], [0], [0, 0, 1, 0], [], []>} : vector<8x256xf32>, vector<128x256xf32>, vector<8x128xf32> -> vector<8x128xf32>
    %c0_19 = arith.constant 0 : index
    %c0_20 = arith.constant 0 : index
    %78 = vector.load %arg5[%c0_19, %c0_20] : memref<8x128xf32, #tpu.memory_space<vmem>>, vector<8x128xf32>
    tpu.vector_store %arg5[%c0_19, %c0_20], %77 {strides = array<i32>} : memref<8x128xf32, #tpu.memory_space<vmem>>, vector<8x128xf32>,
    return
  }
  func.func @transform_0(%arg0: i32, %arg1: i32) -> (i32, i32) {
    %c0_i32 = arith.constant 0 : i32
    %c0_i32_0 = arith.constant 0 : i32
    return %arg0, %c0_i32 : i32, i32
  }
  func.func @transform_1(%arg0: i32, %arg1: i32) -> (i32, i32) {
    %c0_i32 = arith.constant 0 : i32
    %c0_i32_0 = arith.constant 0 : i32
    return %arg1, %c0_i32 : i32, i32
  }
  func.func @transform_2(%arg0: i32, %arg1: i32) -> (i32, i32) {
    %c0_i32 = arith.constant 0 : i32
    %c0_i32_0 = arith.constant 0 : i32
    %c0_i32_1 = arith.constant 0 : i32
    return %c0_i32, %c0_i32_0 : i32, i32
  }
  func.func @transform_3(%arg0: i32, %arg1: i32) -> (i32, i32) {
    %c0_i32 = arith.constant 0 : i32
    return %arg0, %arg1 : i32, i32
  }
}

</mosaic_0001>

<llo_original>
// kernel: tpu_custom_call.1
$region0: #{tpu_custom_call.1}
  #allocation0 [shape = 'u32[]', space=smem, size = 0x4, offset = 0x4, fixed_abs, tag = 'smem constant byte address 0x4 - core index']
  #allocation1 [shape = 'u32[144,128]{1,0:T(1,128)}', space=vmem, size = 0x12000, scoped, tag = 'internal scratch']
  %s0 = inlined_call_operand.hbm [shape: f32[8,256], index: 0, kind: input, shape index: {}]
  %s1 = inlined_call_operand.hbm [shape: f32[128,256], index: 1, kind: input, shape index: {}]
  %s2 = inlined_call_operand.vmem [shape: f32[1,256], index: 2, kind: input, shape index: {}]
  %s3 = inlined_call_operand.hbm [shape: f32[8,128], index: 3, kind: output, shape index: {}]
  %s4 = sld [smem:[#allocation0]]
  $region30: #{tpu_custom_call.1} parent=0
    _
  %s6 = ssub.s32 1, %s4
  %s7 = scalar_select 0, %s6, %s4
  $region1: #{tpu_custom_call.1} parent=0
    #allocation2 [shape = 'u8[8192]{0}', space=vmem, size = 0x2000, scoped, tag = 'input window, operand 0, single buffered']
    #allocation3 [shape = 's32[1]{0}', space=sflag, size = 0x4, scoped, tag = 'scoped memory for tpu_custom_call.1']
    #allocation4 [shape = 's32[1]{0}', space=sflag, size = 0x4, scoped, tag = 'scoped memory for tpu_custom_call.1']
    #allocation5 [shape = 'u8[131072]{0}', space=vmem, size = 0x20000, scoped, tag = 'input window, operand 1, single buffered']
    #allocation6 [shape = 's32[1]{0}', space=sflag, size = 0x4, scoped, tag = 'scoped memory for tpu_custom_call.1']
    #allocation7 [shape = 'u8[4096]{0}', space=vmem, size = 0x1000, scoped, tag = 'output window, operand 0, single buffered']
    %8 = vsyncpa [#allocation3], 0
    %9 = vsyncpa [#allocation6], 0
    %10 = vsyncpa [#allocation4], 0
    // Predicated region
    $region2: #{tpu_custom_call.1} parent=1 // pred_check
      _
    $region3: #{tpu_custom_call.1} parent=1 // pred_check_branch
      %12 = sbr.rel (0) target = $region5
    $region4: #{tpu_custom_call.1} parent=1 // pred_region
      %s14 = ssub.s32 256, 256
      %15 = vsyncadd [#allocation3], %s14
      %s17 = sshll.u32 [#allocation2], 4
      %s18 = int_to_ptr.vmem [resolvable:$true] %s17
      %20 = dma.hbm_to_vmem [thread:$0]  %s0, 256, %s18, [#allocation3]
    $region5: #{tpu_custom_call.1} parent=1 // pred_fallthru
      _
    // Predicated region
    $region6: #{tpu_custom_call.1} parent=1 // pred_check
      _
    $region7: #{tpu_custom_call.1} parent=1 // pred_check_branch
      %22 = sbr.rel (0) target = $region9
    $region8: #{tpu_custom_call.1} parent=1 // pred_region
      %s24 = ssub.s32 4096, 4096
      %25 = vsyncadd [#allocation6], %s24
      %s26 = sshll.u32 [#allocation5], 4
      %s27 = int_to_ptr.vmem [resolvable:$true] %s26
      %32 = dma.hbm_to_vmem [thread:$0]  %s1, 4096, %s27, [#allocation6], 256, 256, 16
    $region9: #{tpu_custom_call.1} parent=1 // pred_fallthru
      _
    // Predicated region
    $region10: #{tpu_custom_call.1} parent=1 // pred_check
      _
    $region11: #{tpu_custom_call.1} parent=1 // pred_check_branch
      %34 = sbr.rel (0) target = $region13
    $region12: #{tpu_custom_call.1} parent=1 // pred_region
      _
    $region13: #{tpu_custom_call.1} parent=1 // pred_fallthru
      _
    // Predicated region
    $region14: #{tpu_custom_call.1} parent=1 // pred_check
      _
    $region15: #{tpu_custom_call.1} parent=1 // pred_check_branch
      %36 = sbr.rel (0) target = $region17
    $region16: #{tpu_custom_call.1} parent=1 // pred_region
      %37 = dma.done [#allocation3], 256
    $region17: #{tpu_custom_call.1} parent=1 // pred_fallthru
      _
    // Predicated region
    $region18: #{tpu_custom_call.1} parent=1 // pred_check
      _
    $region19: #{tpu_custom_call.1} parent=1 // pred_check_branch
      %39 = sbr.rel (0) target = $region21
    $region20: #{tpu_custom_call.1} parent=1 // pred_region
      %40 = dma.done [#allocation6], 4096
    $region21: #{tpu_custom_call.1} parent=1 // pred_fallthru
      _
    %v41 = vld [vmem:[#allocation2] sm:$0xff]
    %v42 = vld [vmem:[#allocation2 + $0x8] sm:$0xff]
    %v43 = vld [vmem:[#allocation5] sm:$0xff]
    %v44 = vld [vmem:[#allocation5 + $0x8] sm:$0xff]
    %v45 = vld [vmem:[#allocation5 + $0x10] sm:$0xff]
    %v46 = vld [vmem:[#allocation5 + $0x18] sm:$0xff]
    %v47 = vld [vmem:[#allocation5 + $0x20] sm:$0xff]
    %v48 = vld [vmem:[#allocation5 + $0x28] sm:$0xff]
    %v49 = vld [vmem:[#allocation5 + $0x30] sm:$0xff]
    %v50 = vld [vmem:[#allocation5 + $0x38] sm:$0xff]
    %v51 = vld [vmem:[#allocation5 + $0x40] sm:$0xff]
    %v52 = vld [vmem:[#allocation5 + $0x48] sm:$0xff]
    %v53 = vld [vmem:[#allocation5 + $0x50] sm:$0xff]
    %v54 = vld [vmem:[#allocation5 + $0x58] sm:$0xff]
    %v55 = vld [vmem:[#allocation5 + $0x60] sm:$0xff]
    %v56 = vld [vmem:[#allocation5 + $0x68] sm:$0xff]
    %v57 = vld [vmem:[#allocation5 + $0x70] sm:$0xff]
    %v58 = vld [vmem:[#allocation5 + $0x78] sm:$0xff]
    %v59 = vld [vmem:[#allocation5 + $0x80] sm:$0xff]
    %v60 = vld [vmem:[#allocation5 + $0x88] sm:$0xff]
    %v61 = vld [vmem:[#allocation5 + $0x90] sm:$0xff]
    %v62 = vld [vmem:[#allocation5 + $0x98] sm:$0xff]
    %v63 = vld [vmem:[#allocation5 + $0xa0] sm:$0xff]
    %v64 = vld [vmem:[#allocation5 + $0xa8] sm:$0xff]
    %v65 = vld [vmem:[#allocation5 + $0xb0] sm:$0xff]
    %v66 = vld [vmem:[#allocation5 + $0xb8] sm:$0xff]
    %v67 = vld [vmem:[#allocation5 + $0xc0] sm:$0xff]
    %v68 = vld [vmem:[#allocation5 + $0xc8] sm:$0xff]
    %v69 = vld [vmem:[#allocation5 + $0xd0] sm:$0xff]
    %v70 = vld [vmem:[#allocation5 + $0xd8] sm:$0xff]
    %v71 = vld [vmem:[#allocation5 + $0xe0] sm:$0xff]
    %v72 = vld [vmem:[#allocation5 + $0xe8] sm:$0xff]
    %v73 = vld [vmem:[#allocation5 + $0xf0] sm:$0xff]
    %v74 = vld [vmem:[#allocation5 + $0xf8] sm:$0xff]
    %v75 = vld [vmem:[%s2] sm:$0x3]
    %v76 = vmul.f32 %v43, %v43
    %v77 = vmul.f32 %v45, %v45
    %v78 = vmul.f32 %v47, %v47
    %v79 = vmul.f32 %v49, %v49
    %v80 = vmul.f32 %v51, %v51
    %v81 = vmul.f32 %v53, %v53
    %v82 = vmul.f32 %v55, %v55
    %v83 = vmul.f32 %v57, %v57
    %v84 = vmul.f32 %v59, %v59
    %v85 = vmul.f32 %v61, %v61
    %v86 = vmul.f32 %v63, %v63
    %v87 = vmul.f32 %v65, %v65
    %v88 = vmul.f32 %v67, %v67
    %v89 = vmul.f32 %v69, %v69
    %v90 = vmul.f32 %v71, %v71
    %v91 = vmul.f32 %v73, %v73
    %92 = vadd.xlane.f32.xlu0 %v76
    %v93 = vpop.xlane.xlu0 %92
    %94 = vadd.xlane.f32.xlu0 %v77
    %v95 = vpop.xlane.xlu0 %94
    %96 = vadd.xlane.f32.xlu0 %v78
    %v97 = vpop.xlane.xlu0 %96
    %98 = vadd.xlane.f32.xlu0 %v79
    %v99 = vpop.xlane.xlu0 %98
    %100 = vadd.xlane.f32.xlu0 %v80
    %v101 = vpop.xlane.xlu0 %100
    %102 = vadd.xlane.f32.xlu0 %v81
    %v103 = vpop.xlane.xlu0 %102
    %104 = vadd.xlane.f32.xlu0 %v82
    %v105 = vpop.xlane.xlu0 %104
    %106 = vadd.xlane.f32.xlu0 %v83
    %v107 = vpop.xlane.xlu0 %106
    %108 = vadd.xlane.f32.xlu0 %v84
    %v109 = vpop.xlane.xlu0 %108
    %110 = vadd.xlane.f32.xlu0 %v85
    %v111 = vpop.xlane.xlu0 %110
    %112 = vadd.xlane.f32.xlu0 %v86
    %v113 = vpop.xlane.xlu0 %112
    %114 = vadd.xlane.f32.xlu0 %v87
    %v115 = vpop.xlane.xlu0 %114
    %116 = vadd.xlane.f32.xlu0 %v88
    %v117 = vpop.xlane.xlu0 %116
    %118 = vadd.xlane.f32.xlu0 %v89
    %v119 = vpop.xlane.xlu0 %118
    %120 = vadd.xlane.f32.xlu0 %v90
    %v121 = vpop.xlane.xlu0 %120
    %122 = vadd.xlane.f32.xlu0 %v91
    %v123 = vpop.xlane.xlu0 %122
    %v124 = vrsqrt.pop %v93
    %v125 = vmul.f32 %v93, %v124
    %vm126 = vcmp.eq.f32.partialorder %v93, inf
    %v127 = vsel %vm126, %v93, %v125
    %vm128 = vcmp.eq.f32.partialorder %v93, 0.0
    %v129 = vand.u32 %v93, 2147483648
    %v130 = vsel %vm128, %v129, %v127
    %v131 = vrsqrt.pop %v95
    %v132 = vmul.f32 %v95, %v131
    %vm133 = vcmp.eq.f32.partialorder %v95, inf
    %v134 = vsel %vm133, %v95, %v132
    %vm135 = vcmp.eq.f32.partialorder %v95, 0.0
    %v136 = vand.u32 %v95, 2147483648
    %v137 = vsel %vm135, %v136, %v134
    %v138 = vrsqrt.pop %v97
    %v139 = vmul.f32 %v97, %v138
    %vm140 = vcmp.eq.f32.partialorder %v97, inf
    %v141 = vsel %vm140, %v97, %v139
    %vm142 = vcmp.eq.f32.partialorder %v97, 0.0
    %v143 = vand.u32 %v97, 2147483648
    %v144 = vsel %vm142, %v143, %v141
    %v145 = vrsqrt.pop %v99
    %v146 = vmul.f32 %v99, %v145
    %vm147 = vcmp.eq.f32.partialorder %v99, inf
    %v148 = vsel %vm147, %v99, %v146
    %vm149 = vcmp.eq.f32.partialorder %v99, 0.0
    %v150 = vand.u32 %v99, 2147483648
    %v151 = vsel %vm149, %v150, %v148
    %v152 = vrsqrt.pop %v101
    %v153 = vmul.f32 %v101, %v152
    %vm154 = vcmp.eq.f32.partialorder %v101, inf
    %v155 = vsel %vm154, %v101, %v153
    %vm156 = vcmp.eq.f32.partialorder %v101, 0.0
    %v157 = vand.u32 %v101, 2147483648
    %v158 = vsel %vm156, %v157, %v155
    %v159 = vrsqrt.pop %v103
    %v160 = vmul.f32 %v103, %v159
    %vm161 = vcmp.eq.f32.partialorder %v103, inf
    %v162 = vsel %vm161, %v103, %v160
    %vm163 = vcmp.eq.f32.partialorder %v103, 0.0
    %v164 = vand.u32 %v103, 2147483648
    %v165 = vsel %vm163, %v164, %v162
    %v166 = vrsqrt.pop %v105
    %v167 = vmul.f32 %v105, %v166
    %vm168 = vcmp.eq.f32.partialorder %v105, inf
    %v169 = vsel %vm168, %v105, %v167
    %vm170 = vcmp.eq.f32.partialorder %v105, 0.0
    %v171 = vand.u32 %v105, 2147483648
    %v172 = vsel %vm170, %v171, %v169
    %v173 = vrsqrt.pop %v107
    %v174 = vmul.f32 %v107, %v173
    %vm175 = vcmp.eq.f32.partialorder %v107, inf
    %v176 = vsel %vm175, %v107, %v174
    %vm177 = vcmp.eq.f32.partialorder %v107, 0.0
    %v178 = vand.u32 %v107, 2147483648
    %v179 = vsel %vm177, %v178, %v176
    %v180 = vrsqrt.pop %v109
    %v181 = vmul.f32 %v109, %v180
    %vm182 = vcmp.eq.f32.partialorder %v109, inf
    %v183 = vsel %vm182, %v109, %v181
    %vm184 = vcmp.eq.f32.partialorder %v109, 0.0
    %v185 = vand.u32 %v109, 2147483648
    %v186 = vsel %vm184, %v185, %v183
    %v187 = vrsqrt.pop %v111
    %v188 = vmul.f32 %v111, %v187
    %vm189 = vcmp.eq.f32.partialorder %v111, inf
    %v190 = vsel %vm189, %v111, %v188
    %vm191 = vcmp.eq.f32.partialorder %v111, 0.0
    %v192 = vand.u32 %v111, 2147483648
    %v193 = vsel %vm191, %v192, %v190
    %v194 = vrsqrt.pop %v113
    %v195 = vmul.f32 %v113, %v194
    %vm196 = vcmp.eq.f32.partialorder %v113, inf
    %v197 = vsel %vm196, %v113, %v195
    %vm198 = vcmp.eq.f32.partialorder %v113, 0.0
    %v199 = vand.u32 %v113, 2147483648
    %v200 = vsel %vm198, %v199, %v197
    %v201 = vrsqrt.pop %v115
    %v202 = vmul.f32 %v115, %v201
    %vm203 = vcmp.eq.f32.partialorder %v115, inf
    %v204 = vsel %vm203, %v115, %v202
    %vm205 = vcmp.eq.f32.partialorder %v115, 0.0
    %v206 = vand.u32 %v115, 2147483648
    %v207 = vsel %vm205, %v206, %v204
    %v208 = vrsqrt.pop %v117
    %v209 = vmul.f32 %v117, %v208
    %vm210 = vcmp.eq.f32.partialorder %v117, inf
    %v211 = vsel %vm210, %v117, %v209
    %vm212 = vcmp.eq.f32.partialorder %v117, 0.0
    %v213 = vand.u32 %v117, 2147483648
    %v214 = vsel %vm212, %v213, %v211
    %v215 = vrsqrt.pop %v119
    %v216 = vmul.f32 %v119, %v215
    %vm217 = vcmp.eq.f32.partialorder %v119, inf
    %v218 = vsel %vm217, %v119, %v216
    %vm219 = vcmp.eq.f32.partialorder %v119, 0.0
    %v220 = vand.u32 %v119, 2147483648
    %v221 = vsel %vm219, %v220, %v218
    %v222 = vrsqrt.pop %v121
    %v223 = vmul.f32 %v121, %v222
    %vm224 = vcmp.eq.f32.partialorder %v121, inf
    %v225 = vsel %vm224, %v121, %v223
    %vm226 = vcmp.eq.f32.partialorder %v121, 0.0
    %v227 = vand.u32 %v121, 2147483648
    %v228 = vsel %vm226, %v227, %v225
    %v229 = vrsqrt.pop %v123
    %v230 = vmul.f32 %v123, %v229
    %vm231 = vcmp.eq.f32.partialorder %v123, inf
    %v232 = vsel %vm231, %v123, %v230
    %vm233 = vcmp.eq.f32.partialorder %v123, 0.0
    %v234 = vand.u32 %v123, 2147483648
    %v235 = vsel %vm233, %v234, %v232
    %v236 = vadd.f32 %v130, 0.03125
    %v237 = vadd.f32 %v137, 0.03125
    %v238 = vadd.f32 %v144, 0.03125
    %v239 = vadd.f32 %v151, 0.03125
    %v240 = vadd.f32 %v158, 0.03125
    %v241 = vadd.f32 %v165, 0.03125
    %v242 = vadd.f32 %v172, 0.03125
    %v243 = vadd.f32 %v179, 0.03125
    %v244 = vadd.f32 %v186, 0.03125
    %v245 = vadd.f32 %v193, 0.03125
    %v246 = vadd.f32 %v200, 0.03125
    %v247 = vadd.f32 %v207, 0.03125
    %v248 = vadd.f32 %v214, 0.03125
    %v249 = vadd.f32 %v221, 0.03125
    %v250 = vadd.f32 %v228, 0.03125
    %v251 = vadd.f32 %v235, 0.03125
    %v252 = vrcp.pop %v236
    %v253 = vrcp.pop %v237
    %v254 = vrcp.pop %v238
    %v255 = vrcp.pop %v239
    %v256 = vrcp.pop %v240
    %v257 = vrcp.pop %v241
    %v258 = vrcp.pop %v242
    %v259 = vrcp.pop %v243
    %v260 = vrcp.pop %v244
    %v261 = vrcp.pop %v245
    %v262 = vrcp.pop %v246
    %v263 = vrcp.pop %v247
    %v264 = vrcp.pop %v248
    %v265 = vrcp.pop %v249
    %v266 = vrcp.pop %v250
    %v267 = vrcp.pop %v251
    %v268 = vmul.f32 %v43, %v252
    %v269 = vmul.f32 %v45, %v253
    %v270 = vmul.f32 %v47, %v254
    %v271 = vmul.f32 %v49, %v255
    %v272 = vmul.f32 %v51, %v256
    %v273 = vmul.f32 %v53, %v257
    %v274 = vmul.f32 %v55, %v258
    %v275 = vmul.f32 %v57, %v259
    %v276 = vmul.f32 %v59, %v260
    %v277 = vmul.f32 %v61, %v261
    %v278 = vmul.f32 %v63, %v262
    %v279 = vmul.f32 %v65, %v263
    %v280 = vmul.f32 %v67, %v264
    %v281 = vmul.f32 %v69, %v265
    %v282 = vmul.f32 %v71, %v266
    %v283 = vmul.f32 %v73, %v267
    %v284 = vmul.f32 %v41, %v41
    %285 = vadd.xlane.f32.xlu0 %v284
    %v286 = vpop.xlane.xlu0 %285
    %v287 = vrsqrt.pop %v286
    %v288 = vmul.f32 %v287, 8.0
    %v289 = vmul.f32 %v41, %v288
    %v290 = vmul.f32 %v75, %v75
    %vm291 = vcmask 1040384
    %v292 = vsel %vm291, %v290, 0.0
    %293 = vadd.xlane.f32.xlu0 %v292
    %v294 = vpop.xlane.xlu0 %293
    %v295 = vrsqrt.pop %v294
    %v296 = vmul.f32 %v75, %v295
    %v298 = vlaneseq
    %v299 = vshrl.u32 %v298, 7
    %v300 = vsub.s32 0, %v299
    %v301 = vrot.slane %v296, %v300
    %v303 = vmul.f32 %v289, %v301
    %304 = vadd.xlane.f32.xlu0 %v303
    %v305 = vpop.xlane.xlu0 %304
    %v306 = vmul.f32 %v305, 3.0
    %v307 = vmul.f32 %v306, %v301
    %v308 = vsub.f32 %v289, %v307
    %v309 = vmul.f32 %v44, %v44
    %v310 = vmul.f32 %v46, %v46
    %v311 = vmul.f32 %v48, %v48
    %v312 = vmul.f32 %v50, %v50
    %v313 = vmul.f32 %v52, %v52
    %v314 = vmul.f32 %v54, %v54
    %v315 = vmul.f32 %v56, %v56
    %v316 = vmul.f32 %v58, %v58
    %v317 = vmul.f32 %v60, %v60
    %v318 = vmul.f32 %v62, %v62
    %v319 = vmul.f32 %v64, %v64
    %v320 = vmul.f32 %v66, %v66
    %v321 = vmul.f32 %v68, %v68
    %v322 = vmul.f32 %v70, %v70
    %v323 = vmul.f32 %v72, %v72
    %v324 = vmul.f32 %v74, %v74
    %325 = vadd.xlane.f32.xlu0 %v309
    %v326 = vpop.xlane.xlu0 %325
    %327 = vadd.xlane.f32.xlu0 %v310
    %v328 = vpop.xlane.xlu0 %327
    %329 = vadd.xlane.f32.xlu0 %v311
    %v330 = vpop.xlane.xlu0 %329
    %331 = vadd.xlane.f32.xlu0 %v312
    %v332 = vpop.xlane.xlu0 %331
    %333 = vadd.xlane.f32.xlu0 %v313
    %v334 = vpop.xlane.xlu0 %333
    %335 = vadd.xlane.f32.xlu0 %v314
    %v336 = vpop.xlane.xlu0 %335
    %337 = vadd.xlane.f32.xlu0 %v315
    %v338 = vpop.xlane.xlu0 %337
    %339 = vadd.xlane.f32.xlu0 %v316
    %v340 = vpop.xlane.xlu0 %339
    %341 = vadd.xlane.f32.xlu0 %v317
    %v342 = vpop.xlane.xlu0 %341
    %343 = vadd.xlane.f32.xlu0 %v318
    %v344 = vpop.xlane.xlu0 %343
    %345 = vadd.xlane.f32.xlu0 %v319
    %v346 = vpop.xlane.xlu0 %345
    %347 = vadd.xlane.f32.xlu0 %v320
    %v348 = vpop.xlane.xlu0 %347
    %349 = vadd.xlane.f32.xlu0 %v321
    %v350 = vpop.xlane.xlu0 %349
    %351 = vadd.xlane.f32.xlu0 %v322
    %v352 = vpop.xlane.xlu0 %351
    %353 = vadd.xlane.f32.xlu0 %v323
    %v354 = vpop.xlane.xlu0 %353
    %355 = vadd.xlane.f32.xlu0 %v324
    %v356 = vpop.xlane.xlu0 %355
    %v357 = vrsqrt.pop %v326
    %v358 = vmul.f32 %v326, %v357
    %vm359 = vcmp.eq.f32.partialorder %v326, inf
    %v360 = vsel %vm359, %v326, %v358
    %vm361 = vcmp.eq.f32.partialorder %v326, 0.0
    %v362 = vand.u32 %v326, 2147483648
    %v363 = vsel %vm361, %v362, %v360
    %v364 = vrsqrt.pop %v328
    %v365 = vmul.f32 %v328, %v364
    %vm366 = vcmp.eq.f32.partialorder %v328, inf
    %v367 = vsel %vm366, %v328, %v365
    %vm368 = vcmp.eq.f32.partialorder %v328, 0.0
    %v369 = vand.u32 %v328, 2147483648
    %v370 = vsel %vm368, %v369, %v367
    %v371 = vrsqrt.pop %v330
    %v372 = vmul.f32 %v330, %v371
    %vm373 = vcmp.eq.f32.partialorder %v330, inf
    %v374 = vsel %vm373, %v330, %v372
    %vm375 = vcmp.eq.f32.partialorder %v330, 0.0
    %v376 = vand.u32 %v330, 2147483648
    %v377 = vsel %vm375, %v376, %v374
    %v378 = vrsqrt.pop %v332
    %v379 = vmul.f32 %v332, %v378
    %vm380 = vcmp.eq.f32.partialorder %v332, inf
    %v381 = vsel %vm380, %v332, %v379
    %vm382 = vcmp.eq.f32.partialorder %v332, 0.0
    %v383 = vand.u32 %v332, 2147483648
    %v384 = vsel %vm382, %v383, %v381
    %v385 = vrsqrt.pop %v334
    %v386 = vmul.f32 %v334, %v385
    %vm387 = vcmp.eq.f32.partialorder %v334, inf
    %v388 = vsel %vm387, %v334, %v386
    %vm389 = vcmp.eq.f32.partialorder %v334, 0.0
    %v390 = vand.u32 %v334, 2147483648
    %v391 = vsel %vm389, %v390, %v388
    %v392 = vrsqrt.pop %v336
    %v393 = vmul.f32 %v336, %v392
    %vm394 = vcmp.eq.f32.partialorder %v336, inf
    %v395 = vsel %vm394, %v336, %v393
    %vm396 = vcmp.eq.f32.partialorder %v336, 0.0
    %v397 = vand.u32 %v336, 2147483648
    %v398 = vsel %vm396, %v397, %v395
    %v399 = vrsqrt.pop %v338
    %v400 = vmul.f32 %v338, %v399
    %vm401 = vcmp.eq.f32.partialorder %v338, inf
    %v402 = vsel %vm401, %v338, %v400
    %vm403 = vcmp.eq.f32.partialorder %v338, 0.0
    %v404 = vand.u32 %v338, 2147483648
    %v405 = vsel %vm403, %v404, %v402
    %v406 = vrsqrt.pop %v340
    %v407 = vmul.f32 %v340, %v406
    %vm408 = vcmp.eq.f32.partialorder %v340, inf
    %v409 = vsel %vm408, %v340, %v407
    %vm410 = vcmp.eq.f32.partialorder %v340, 0.0
    %v411 = vand.u32 %v340, 2147483648
    %v412 = vsel %vm410, %v411, %v409
    %v413 = vrsqrt.pop %v342
    %v414 = vmul.f32 %v342, %v413
    %vm415 = vcmp.eq.f32.partialorder %v342, inf
    %v416 = vsel %vm415, %v342, %v414
    %vm417 = vcmp.eq.f32.partialorder %v342, 0.0
    %v418 = vand.u32 %v342, 2147483648
    %v419 = vsel %vm417, %v418, %v416
    %v420 = vrsqrt.pop %v344
    %v421 = vmul.f32 %v344, %v420
    %vm422 = vcmp.eq.f32.partialorder %v344, inf
    %v423 = vsel %vm422, %v344, %v421
    %vm424 = vcmp.eq.f32.partialorder %v344, 0.0
    %v425 = vand.u32 %v344, 2147483648
    %v426 = vsel %vm424, %v425, %v423
    %v427 = vrsqrt.pop %v346
    %v428 = vmul.f32 %v346, %v427
    %vm429 = vcmp.eq.f32.partialorder %v346, inf
    %v430 = vsel %vm429, %v346, %v428
    %vm431 = vcmp.eq.f32.partialorder %v346, 0.0
    %v432 = vand.u32 %v346, 2147483648
    %v433 = vsel %vm431, %v432, %v430
    %v434 = vrsqrt.pop %v348
    %v435 = vmul.f32 %v348, %v434
    %vm436 = vcmp.eq.f32.partialorder %v348, inf
    %v437 = vsel %vm436, %v348, %v435
    %vm438 = vcmp.eq.f32.partialorder %v348, 0.0
    %v439 = vand.u32 %v348, 2147483648
    %v440 = vsel %vm438, %v439, %v437
    %v441 = vrsqrt.pop %v350
    %v442 = vmul.f32 %v350, %v441
    %vm443 = vcmp.eq.f32.partialorder %v350, inf
    %v444 = vsel %vm443, %v350, %v442
    %vm445 = vcmp.eq.f32.partialorder %v350, 0.0
    %v446 = vand.u32 %v350, 2147483648
    %v447 = vsel %vm445, %v446, %v444
    %v448 = vrsqrt.pop %v352
    %v449 = vmul.f32 %v352, %v448
    %vm450 = vcmp.eq.f32.partialorder %v352, inf
    %v451 = vsel %vm450, %v352, %v449
    %vm452 = vcmp.eq.f32.partialorder %v352, 0.0
    %v453 = vand.u32 %v352, 2147483648
    %v454 = vsel %vm452, %v453, %v451
    %v455 = vrsqrt.pop %v354
    %v456 = vmul.f32 %v354, %v455
    %vm457 = vcmp.eq.f32.partialorder %v354, inf
    %v458 = vsel %vm457, %v354, %v456
    %vm459 = vcmp.eq.f32.partialorder %v354, 0.0
    %v460 = vand.u32 %v354, 2147483648
    %v461 = vsel %vm459, %v460, %v458
    %v462 = vrsqrt.pop %v356
    %v463 = vmul.f32 %v356, %v462
    %vm464 = vcmp.eq.f32.partialorder %v356, inf
    %v465 = vsel %vm464, %v356, %v463
    %vm466 = vcmp.eq.f32.partialorder %v356, 0.0
    %v467 = vand.u32 %v356, 2147483648
    %v468 = vsel %vm466, %v467, %v465
    %v469 = vadd.f32 %v363, 0.03125
    %v470 = vadd.f32 %v370, 0.03125
    %v471 = vadd.f32 %v377, 0.03125
    %v472 = vadd.f32 %v384, 0.03125
    %v473 = vadd.f32 %v391, 0.03125
    %v474 = vadd.f32 %v398, 0.03125
    %v475 = vadd.f32 %v405, 0.03125
    %v476 = vadd.f32 %v412, 0.03125
    %v477 = vadd.f32 %v419, 0.03125
    %v478 = vadd.f32 %v426, 0.03125
    %v479 = vadd.f32 %v433, 0.03125
    %v480 = vadd.f32 %v440, 0.03125
    %v481 = vadd.f32 %v447, 0.03125
    %v482 = vadd.f32 %v454, 0.03125
    %v483 = vadd.f32 %v461, 0.03125
    %v484 = vadd.f32 %v468, 0.03125
    %v485 = vrcp.pop %v469
    %v486 = vrcp.pop %v470
    %v487 = vrcp.pop %v471
    %v488 = vrcp.pop %v472
    %v489 = vrcp.pop %v473
    %v490 = vrcp.pop %v474
    %v491 = vrcp.pop %v475
    %v492 = vrcp.pop %v476
    %v493 = vrcp.pop %v477
    %v494 = vrcp.pop %v478
    %v495 = vrcp.pop %v479
    %v496 = vrcp.pop %v480
    %v497 = vrcp.pop %v481
    %v498 = vrcp.pop %v482
    %v499 = vrcp.pop %v483
    %v500 = vrcp.pop %v484
    %v501 = vmul.f32 %v44, %v485
    %v502 = vmul.f32 %v46, %v486
    %v503 = vmul.f32 %v48, %v487
    %v504 = vmul.f32 %v50, %v488
    %v505 = vmul.f32 %v52, %v489
    %v506 = vmul.f32 %v54, %v490
    %v507 = vmul.f32 %v56, %v491
    %v508 = vmul.f32 %v58, %v492
    %v509 = vmul.f32 %v60, %v493
    %v510 = vmul.f32 %v62, %v494
    %v511 = vmul.f32 %v64, %v495
    %v512 = vmul.f32 %v66, %v496
    %v513 = vmul.f32 %v68, %v497
    %v514 = vmul.f32 %v70, %v498
    %v515 = vmul.f32 %v72, %v499
    %v516 = vmul.f32 %v74, %v500
    %v517 = vmul.f32 %v42, %v42
    %518 = vadd.xlane.f32.xlu0 %v517
    %v519 = vpop.xlane.xlu0 %518
    %v520 = vrsqrt.pop %v519
    %v521 = vmul.f32 %v520, 8.0
    %v522 = vmul.f32 %v42, %v521
    %v524 = vrot.slane %v75, 1
    %v526 = vmul.f32 %v524, %v524
    %v527 = vsel %vm291, %v526, 0.0
    %528 = vadd.xlane.f32.xlu0 %v527
    %v529 = vpop.xlane.xlu0 %528
    %v530 = vrsqrt.pop %v529
    %v531 = vmul.f32 %v524, %v530
    %v533 = vlaneseq
    %v534 = vshrl.u32 %v533, 7
    %v535 = vsub.s32 0, %v534
    %v536 = vrot.slane %v531, %v535
    %v538 = vmul.f32 %v522, %v536
    %539 = vadd.xlane.f32.xlu0 %v538
    %v540 = vpop.xlane.xlu0 %539
    %v541 = vmul.f32 %v540, 3.0
    %v542 = vmul.f32 %v541, %v536
    %v543 = vsub.f32 %v522, %v542
    %544 = vmatprep.subr.mxu0 %v501
    %545 = vmatpush1.xpose.msra.mxu0 %v268
    %546 = vmatprep.subr.mxu0 %v502
    %547 = vmatpush1.xpose.msra.mxu0 %v269
    %548 = vmatprep.subr.mxu0 %v503
    %549 = vmatpush1.xpose.msra.mxu0 %v270
    %550 = vmatprep.subr.mxu0 %v504
    %551 = vmatpush1.xpose.msra.mxu0 %v271
    %552 = vmatprep.subr.mxu0 %v505
    %553 = vmatpush1.xpose.msra.mxu0 %v272
    %554 = vmatprep.subr.mxu0 %v506
    %555 = vmatpush1.xpose.msra.mxu0 %v273
    %556 = vmatprep.subr.mxu0 %v507
    %557 = vmatpush1.xpose.msra.mxu0 %v274
    %558 = vmatprep.subr.mxu0 %v508
    %559 = vmatpush1.xpose.msra.mxu0 %v275
    %560 = vmatprep.subr.mxu0 %v509
    %561 = vmatpush1.xpose.msra.mxu0 %v276
    %562 = vmatprep.subr.mxu0 %v510
    %563 = vmatpush1.xpose.msra.mxu0 %v277
    %564 = vmatprep.subr.mxu0 %v511
    %565 = vmatpush1.xpose.msra.mxu0 %v278
    %566 = vmatprep.subr.mxu0 %v512
    %567 = vmatpush1.xpose.msra.mxu0 %v279
    %568 = vmatprep.subr.mxu0 %v513
    %569 = vmatpush1.xpose.msra.mxu0 %v280
    %570 = vmatprep.subr.mxu0 %v514
    %571 = vmatpush1.xpose.msra.mxu0 %v281
    %572 = vmatprep.subr.mxu0 %v515
    %573 = vmatpush1.xpose.msra.mxu0 %v282
    %574 = vmatprep.subr.mxu0 %v516
    %575 = vmatpush1.xpose.msra.mxu0 %v283
    %576 = vmatprep.subr.mxu0 0.0
    %577 = vmatpush1.xpose.msra.mxu0 0.0
    %578 = vmatprep.subr.mxu0 0.0
    %579 = vmatpush1.xpose.msra.mxu0 0.0
    %580 = vmatprep.subr.mxu0 0.0
    %581 = vmatpush1.xpose.msra.mxu0 0.0
    %582 = vmatprep.subr.mxu0 0.0
    %583 = vmatpush1.xpose.msra.mxu0 0.0
    %584 = vmatprep.subr.mxu0 0.0
    %585 = vmatpush1.xpose.msra.mxu0 0.0
    %586 = vmatprep.subr.mxu0 0.0
    %587 = vmatpush1.xpose.msra.mxu0 0.0
    %588 = vmatprep.subr.mxu0 0.0
    %589 = vmatpush1.xpose.msra.mxu0 0.0
    %590 = vmatprep.subr.mxu0 0.0
    %591 = vmatpush1.xpose.msra.mxu0 0.0
    %592 = vmatprep.subr.mxu0 0.0
    %593 = vmatpush1.xpose.msra.mxu0 0.0
    %594 = vmatprep.subr.mxu0 0.0
    %595 = vmatpush1.xpose.msra.mxu0 0.0
    %596 = vmatprep.subr.mxu0 0.0
    %597 = vmatpush1.xpose.msra.mxu0 0.0
    %598 = vmatprep.subr.mxu0 0.0
    %599 = vmatpush1.xpose.msra.mxu0 0.0
    %600 = vmatprep.subr.mxu0 0.0
    %601 = vmatpush1.xpose.msra.mxu0 0.0
    %602 = vmatprep.subr.mxu0 0.0
    %603 = vmatpush1.xpose.msra.mxu0 0.0
    %604 = vmatprep.subr.mxu0 0.0
    %605 = vmatpush1.xpose.msra.mxu0 0.0
    %606 = vmatprep.subr.mxu0 0.0
    %607 = vmatpush1.xpose.msra.mxu0 0.0
    %608 = vmatprep.mubr.f32.mxu0 %v543
    %609 = vmatmul.mubr.f32.gmra.mrb[0].mxu0 %v308
    %v610 = vpop.f32.mrb[0].mxu0
    %v611 = vadd.f32 0.0, %v610
    %v612 = vpop.f32.mrb[0].mxu0
    %613 = vdwg.mxu0
    %614 = vst [vmem:[#allocation7] sm:$0xff] %v611
    // Predicated region
    $region22: #{tpu_custom_call.1} parent=1 // pred_check
      _
    $region23: #{tpu_custom_call.1} parent=1 // pred_check_branch
      %616 = sbr.rel (0) target = $region25
    $region24: #{tpu_custom_call.1} parent=1 // pred_region
      %s618 = ssub.s32 128, 128
      %619 = vsyncadd [#allocation4], %s618
      %s621 = sshll.u32 [#allocation7], 4
      %s622 = int_to_ptr.vmem [resolvable:$true] %s621
      %624 = dma.vmem_to_hbm [thread:$0]  %s622, 128, %s3, [#allocation4]
    $region25: #{tpu_custom_call.1} parent=1 // pred_fallthru
      _
    // Predicated region
    $region26: #{tpu_custom_call.1} parent=1 // pred_check
      _
    $region27: #{tpu_custom_call.1} parent=1 // pred_check_branch
      %626 = sbr.rel (0) target = $region29
    $region28: #{tpu_custom_call.1} parent=1 // pred_region
      %627 = dma.done [#allocation4], 128
    $region29: #{tpu_custom_call.1} parent=1 // pred_fallthru
      _
    %628 = vsyncpa [#allocation3], 1
    %629 = vsyncpa [#allocation6], 1
    %630 = vsyncpa [#allocation4], 1

</llo_original>
